<compile_context>
chip_gen: v7x
topology: tpu7x:2x2x1
jax: 0.10.0
libtpu: 0.0.40
codegen_flags: <defaults>
</compile_context>

<pallas_src>
import numpy as np
import jax
import jax.numpy as jnp
from jax.experimental import pallas as pl
from jax.experimental.pallas import tpu as pltpu

_LANE = 128
_TARGET_BLOCK_BYTES = 8 << 20      # per-buffer block target (review: 4-8+ MiB)
_MIN_PARALLEL_STEPS = 4            # keep work for both v7x TensorCores
_PARALLEL_SPLIT_MIN_BYTES = 4 << 20


def _cdiv(a, b):
    return -(-a // b)


def _round_up(x, m):
    return ((x + m - 1) // m) * m


def _round_down(x, m):
    return (x // m) * m


def _vmem_capacity_bytes():
    """Physical VMEM per TensorCore; conservative (v7x) fallback if unknown."""
    try:
        return int(pltpu.get_tpu_info().vmem_capacity_bytes)
    except Exception:
        return 64 << 20


def _pick_tiles(rows, cols, itemsize, vmem_usable):
    """Lane-dense tile sizes for the (rows, cols) image slab.

    Row tile is a multiple of the dtype's packed-sublane granularity (or the
    full extent); lane tile is a multiple of 128 (or the full extent).  The
    cdiv grid masks any ragged tail.
    """
    sublane = max(8, (8 * 4) // itemsize)      # 8 f32, 16 bf16/f16, 32 int8/u8
    # Per-element pipeline footprint: 2 input + 2 output buffers + f32 temp.
    bytes_per_elem = 4 * itemsize + 4
    max_elems = max(sublane * _LANE, (vmem_usable - (4 << 20)) // bytes_per_elem)
    target_elems = min(_TARGET_BLOCK_BYTES // itemsize, max_elems)

    lane_cap = max(_LANE, _round_down(target_elems // sublane, _LANE))
    lane_tile = min(cols, lane_cap)            # full extent (legal) or 128-mult
    row_cap = max(sublane, _round_down(target_elems // max(lane_tile, 1), sublane))
    row_tile = min(rows, row_cap)              # full extent (legal) or sublane-mult

    # Keep >= _MIN_PARALLEL_STEPS grid steps when the array is big enough that
    # sharding across TensorCores / pipelining actually matters.
    if rows * cols * itemsize >= _PARALLEL_SPLIT_MIN_BYTES:
        while _cdiv(rows, row_tile) * _cdiv(cols, lane_tile) < _MIN_PARALLEL_STEPS:
            if row_tile >= 2 * sublane:
                row_tile = _round_up(row_tile // 2, sublane)
            elif lane_tile >= 2 * _LANE:
                lane_tile = _round_up(lane_tile // 2, _LANE)
            else:
                break
    return row_tile, lane_tile, sublane


def _ada_kernel(scale_ref, img_ref, out_ref):
    """One lane-dense tile: fused denorm -> [empty transforms] -> normalize.

    scale_ref : VMEM (row_tile, 1) f32 per-row (per-channel) scale
    img_ref, out_ref : VMEM (row_tile, lane_tile) image tiles
    """
    x = img_ref[...].astype(jnp.float32)
    y = x * scale_ref[...]                       # bias term is exactly 0, dropped
    if jnp.issubdtype(out_ref.dtype, jnp.integer):
        y = jnp.round(y)                         # round-to-nearest, not truncate
    out_ref[...] = y.astype(out_ref.dtype)


def ada_augment_forward(images, masks=None, *, aug_p=0.0, mean=(0.0,), std=(1.0,),
                        skip_identity_fast_path=False, donate_images=False,
                        tile_override=None):
    """JAX/Pallas equivalent of ADAAugment.forward (default transform state).

    images: [N, C, H, W] (NCHW, like PyTorch); masks: same shape or None.
    skip_identity_fast_path: skip the kernel entirely (denorm followed by
        normalize is the identity up to a few ulps) -- the single biggest win
        when bit-level parity with the kernel arithmetic is not required.
    donate_images: alias the image input buffer to the output (only safe when
        the caller no longer needs `images` afterwards).
    tile_override: (row_tile, lane_tile) for testing the ragged-tail path.
    """
    if aug_p <= 0:
        return images, masks

    N, C, H, W = images.shape

    # Masks are untouched by the (empty) transform chain; never round-trip
    # them through the kernel.  masks=None -> zeros (torch.zeros_like(image)).
    masks_out = jnp.zeros_like(images) if masks is None else masks

    # TODO(synk): once real TR.* transforms are wired in, this fast path and
    # the fused scale must be replaced by the actual transform chain.
    if skip_identity_fast_path:
        return images, masks_out

    # Host precompute of the fused per-channel scale (f32).
    mean_c = np.broadcast_to(np.asarray(mean, np.float32), (C,)).astype(np.float32)
    std_c = np.broadcast_to(np.asarray(std, np.float32), (C,)).astype(np.float32)
    del mean_c  # (mean - mean)/std == 0 exactly -> bias dropped
    scale_c = (std_c / std_c).astype(np.float32)   # == 1.0f exactly for valid std

    rows, cols = N * C, H * W
    # Row r = n*C + c -> channel = r % C, so per-row constants tile over N.
    scale_rows = jnp.asarray(np.tile(scale_c, N).reshape(rows, 1))

    # Lane-dense layout: free row-major reshape.
    x2d = images.reshape(rows, cols)

    itemsize = jnp.dtype(images.dtype).itemsize
    vmem_usable = int(_vmem_capacity_bytes() * 0.7)
    if tile_override is not None:
        row_tile, lane_tile = tile_override
    else:
        row_tile, lane_tile, _ = _pick_tiles(rows, cols, itemsize, vmem_usable)
    grid = (_cdiv(rows, row_tile), _cdiv(cols, lane_tile))

    # VMEM budget from the actual tiles: 2 in + 2 out pipeline buffers, an
    # f32 compute-temp headroom (covers bf16/int8 upcast), double-buffered
    # lane-padded consts, plus slack -- clamped to the physical capacity.
    img_block = row_tile * lane_tile
    vmem_need = (4 * img_block * itemsize
                 + 4 * img_block
                 + 2 * row_tile * _LANE * 4
                 + (2 << 20))
    vmem_limit = int(max(4 << 20, min(vmem_need, vmem_usable)))

    img_spec = pl.BlockSpec((row_tile, lane_tile), lambda i, j: (i, j))
    const_spec = pl.BlockSpec((row_tile, 1), lambda i, j: (i, 0))

    out2d = pl.pallas_call(
        _ada_kernel,
        out_shape=jax.ShapeDtypeStruct((rows, cols), images.dtype),
        grid=grid,
        in_specs=[const_spec, img_spec],
        out_specs=img_spec,
        input_output_aliases=({1: 0} if donate_images else {}),
        cost_estimate=pl.CostEstimate(
            flops=2 * rows * cols,
            transcendentals=0,
            bytes_accessed=2 * rows * cols * itemsize + rows * 4),
        compiler_params=pltpu.CompilerParams(
            dimension_semantics=("parallel", "parallel"),
            vmem_limit_bytes=vmem_limit,
        ),
    )(scale_rows, x2d)

    return out2d.reshape(N, C, H, W), masks_out


if __name__ == "__main__":
    key = jax.random.PRNGKey(0)
    k_img, k_mask = jax.random.split(key)

    N, C, H, W = 2, 4, 16, 16
    images = jax.random.normal(k_img, (N, C, H, W), dtype=jnp.float32)
    masks = (jax.random.uniform(k_mask, (N, C, H, W)) > 0.5).astype(jnp.float32)

    # non-trivial normalization constants so the kernel actually does work
    mean = [0.485, 0.456, 0.406, 0.5]
    std = [0.229, 0.224, 0.225, 0.25]

    # aug_p > 0 -> kernel path (fused denorm -> [empty transforms] -> normalize)
    out_imgs, out_masks = ada_augment_forward(
        images, masks, aug_p=0.3, mean=mean, std=std
    )
    jax.block_until_ready(out_imgs)
    jax.block_until_ready(out_masks)
    np.testing.assert_allclose(np.asarray(out_imgs), np.asarray(images),
                               rtol=1e-5, atol=1e-5)
    assert out_masks is masks  # masks never round-trip through the kernel
    np.testing.assert_allclose(np.asarray(out_masks), np.asarray(masks))

    # masks=None branch -> zeros masks
    out_imgs2, out_masks2 = ada_augment_forward(
        images, None, aug_p=0.3, mean=mean, std=std
    )
    jax.block_until_ready(out_masks2)
    np.testing.assert_allclose(np.asarray(out_masks2), 0.0)

    # ragged shapes (rows % 8 != 0, cols % 128 != 0) -> full-extent blocks, no
    # whole-array degenerate fallback needed
    imgs_odd = jax.random.normal(k_img, (1, 3, 17, 19), dtype=jnp.float32)
    out_odd, _ = ada_augment_forward(imgs_odd, None, aug_p=0.5,
                                     mean=[0.1, 0.2, 0.3], std=[0.5, 0.6, 0.7])
    jax.block_until_ready(out_odd)
    np.testing.assert_allclose(np.asarray(out_odd), np.asarray(imgs_odd),
                               rtol=1e-5, atol=1e-5)

    # cdiv ragged-tail path: lane tile (128) that does not divide cols (400)
    imgs_tail = jax.random.normal(k_img, (2, 3, 20, 20), dtype=jnp.float32)
    out_tail, _ = ada_augment_forward(imgs_tail, None, aug_p=0.5,
                                      mean=[0.1, 0.2, 0.3], std=[0.5, 0.6, 0.7],
                                      tile_override=(6, 128))
    jax.block_until_ready(out_tail)
    np.testing.assert_allclose(np.asarray(out_tail), np.asarray(imgs_tail),
                               rtol=1e-5, atol=1e-5)

    # aug_p <= 0 branch -> passthrough
    same_imgs, same_masks = ada_augment_forward(images, masks, aug_p=0.0)
    assert same_imgs is images and same_masks is masks

    # optional identity fast path (empty transform chain) -> passthrough
    fast_imgs, fast_masks = ada_augment_forward(
        images, masks, aug_p=0.3, mean=mean, std=std, skip_identity_fast_path=True
    )
    assert fast_imgs is images and fast_masks is masks

    print("KERNEL_OK")
</pallas_src>

<mosaic_0001>
module attributes {stable_mosaic.version = 11 : i64} {
  func.func @_ada_kernel(%arg0: i32, %arg1: i32, %arg2: memref<8x1xf32, #tpu.memory_space<vmem>>, %arg3: memref<8x256xf32, #tpu.memory_space<vmem>>, %arg4: memref<8x256xf32, #tpu.memory_space<vmem>>) attributes {dimension_semantics = [#tpu.dimension_semantics<parallel>, #tpu.dimension_semantics<parallel>], iteration_bounds = array<i64: 1, 1>, scalar_prefetch = 0 : i64, scratch_operands = 0 : i64, tpu.core_type = #tpu.core_type<tc>, window_params = [{transform_indices = @transform_0, window_bounds = array<i64: 8, 1>}, {transform_indices = @transform_1, window_bounds = array<i64: 8, 256>}, {transform_indices = @transform_2, window_bounds = array<i64: 8, 256>}]} {
    %c0 = arith.constant 0 : index
    %c0_0 = arith.constant 0 : index
    %0 = vector.load %arg3[%c0, %c0_0] : memref<8x256xf32, #tpu.memory_space<vmem>>, vector<8x256xf32>
    %c0_1 = arith.constant 0 : index
    %c0_2 = arith.constant 0 : index
    %1 = vector.load %arg2[%c0_1, %c0_2] : memref<8x1xf32, #tpu.memory_space<vmem>>, vector<8x1xf32>
    %2 = vector.broadcast %1 : vector<8x1xf32> to vector<8x256xf32>
    %3 = arith.mulf %0, %2 : vector<8x256xf32>
    %c0_3 = arith.constant 0 : index
    %c0_4 = arith.constant 0 : index
    %4 = vector.load %arg4[%c0_3, %c0_4] : memref<8x256xf32, #tpu.memory_space<vmem>>, vector<8x256xf32>
    tpu.vector_store %arg4[%c0_3, %c0_4], %3 {strides = array<i32>} : memref<8x256xf32, #tpu.memory_space<vmem>>, vector<8x256xf32>,
    return
  }
  func.func @transform_0(%arg0: i32, %arg1: i32) -> (i32, i32) {
    %c0_i32 = arith.constant 0 : i32
    %c0_i32_0 = arith.constant 0 : i32
    return %arg0, %c0_i32 : i32, i32
  }
  func.func @transform_1(%arg0: i32, %arg1: i32) -> (i32, i32) {
    %c0_i32 = arith.constant 0 : i32
    return %arg0, %arg1 : i32, i32
  }
  func.func @transform_2(%arg0: i32, %arg1: i32) -> (i32, i32) {
    %c0_i32 = arith.constant 0 : i32
    return %arg0, %arg1 : i32, i32
  }
}

</mosaic_0001>

<llo_original>
// kernel: tpu_custom_call.1
$region0: #{tpu_custom_call.1}
  #allocation0 [shape = 'u32[]', space=smem, size = 0x4, offset = 0x4, fixed_abs, tag = 'smem constant byte address 0x4 - core index']
  #allocation1 [shape = 'u32[144,128]{1,0:T(1,128)}', space=vmem, size = 0x12000, scoped, tag = 'internal scratch']
  %s0 = inlined_call_operand.vmem [shape: f32[8,1], index: 0, kind: input, shape index: {}]
  %s1 = inlined_call_operand.hbm [shape: f32[8,256], index: 1, kind: input, shape index: {}]
  %s2 = inlined_call_operand.hbm [shape: f32[8,256], index: 2, kind: output, shape index: {}]
  %s3 = sld [smem:[#allocation0]]
  $region22: #{tpu_custom_call.1} parent=0
    _
  %s5 = ssub.s32 1, %s3
  %s6 = scalar_select 0, %s5, %s3
  $region1: #{tpu_custom_call.1} parent=0
    #allocation2 [shape = 'u8[8192]{0}', space=vmem, size = 0x2000, scoped, tag = 'input window, operand 1, single buffered']
    #allocation3 [shape = 's32[1]{0}', space=sflag, size = 0x4, scoped, tag = 'scoped memory for tpu_custom_call.1']
    #allocation4 [shape = 's32[1]{0}', space=sflag, size = 0x4, scoped, tag = 'scoped memory for tpu_custom_call.1']
    #allocation5 [shape = 'u8[8192]{0}', space=vmem, size = 0x2000, scoped, tag = 'output window, operand 0, single buffered']
    %7 = vsyncpa [#allocation3], 0
    %8 = vsyncpa [#allocation4], 0
    // Predicated region
    $region2: #{tpu_custom_call.1} parent=1 // pred_check
      _
    $region3: #{tpu_custom_call.1} parent=1 // pred_check_branch
      %10 = sbr.rel (0) target = $region5
    $region4: #{tpu_custom_call.1} parent=1 // pred_region
      _
    $region5: #{tpu_custom_call.1} parent=1 // pred_fallthru
      _
    // Predicated region
    $region6: #{tpu_custom_call.1} parent=1 // pred_check
      _
    $region7: #{tpu_custom_call.1} parent=1 // pred_check_branch
      %12 = sbr.rel (0) target = $region9
    $region8: #{tpu_custom_call.1} parent=1 // pred_region
      %s14 = ssub.s32 256, 256
      %15 = vsyncadd [#allocation3], %s14
      %s17 = sshll.u32 [#allocation2], 4
      %s18 = int_to_ptr.vmem [resolvable:$true] %s17
      %20 = dma.hbm_to_vmem [thread:$0]  %s1, 256, %s18, [#allocation3]
    $region9: #{tpu_custom_call.1} parent=1 // pred_fallthru
      _
    // Predicated region
    $region10: #{tpu_custom_call.1} parent=1 // pred_check
      _
    $region11: #{tpu_custom_call.1} parent=1 // pred_check_branch
      %22 = sbr.rel (0) target = $region13
    $region12: #{tpu_custom_call.1} parent=1 // pred_region
      %23 = dma.done [#allocation3], 256
    $region13: #{tpu_custom_call.1} parent=1 // pred_fallthru
      _
    %v24 = vld [vmem:[#allocation2] sm:$0xff]
    %v25 = vld [vmem:[#allocation2 + $0x8] sm:$0xff]
    %v26 = vld [vmem:[%s0] sm:$0xff]
    %28 = vset.pattern.permute.xlu0 0
    %29 = vperm.xlu0 %28, %v26
    %v30 = vpop.permute.xlu0 %29
    %v32 = vmul.f32 %v24, %v30
    %v33 = vmul.f32 %v25, %v30
    %34 = vst [vmem:[#allocation5] sm:$0xff] %v32
    %35 = vst [vmem:[#allocation5 + $0x8] sm:$0xff] %v33
    // Predicated region
    $region14: #{tpu_custom_call.1} parent=1 // pred_check
      _
    $region15: #{tpu_custom_call.1} parent=1 // pred_check_branch
      %37 = sbr.rel (0) target = $region17
    $region16: #{tpu_custom_call.1} parent=1 // pred_region
      %s39 = ssub.s32 256, 256
      %40 = vsyncadd [#allocation4], %s39
      %s42 = sshll.u32 [#allocation5], 4
      %s43 = int_to_ptr.vmem [resolvable:$true] %s42
      %45 = dma.vmem_to_hbm [thread:$0]  %s43, 256, %s2, [#allocation4]
    $region17: #{tpu_custom_call.1} parent=1 // pred_fallthru
      _
    // Predicated region
    $region18: #{tpu_custom_call.1} parent=1 // pred_check
      _
    $region19: #{tpu_custom_call.1} parent=1 // pred_check_branch
      %47 = sbr.rel (0) target = $region21
    $region20: #{tpu_custom_call.1} parent=1 // pred_region
      %48 = dma.done [#allocation4], 256
    $region21: #{tpu_custom_call.1} parent=1 // pred_fallthru
      _
    %49 = vsyncpa [#allocation3], 1
    %50 = vsyncpa [#allocation4], 1

</llo_original>
